<compile_context>
chip_gen: v6e
topology: v6e:2x2x1
jax: 0.10.0
libtpu: 0.0.40
codegen_flags: <defaults>
</compile_context>

<pallas_src>
import functools

import jax
import jax.numpy as jnp
from jax import lax
from jax.experimental import pallas as pl
from jax.experimental.pallas import tpu as pltpu


def _round_up(n, m):
    return ((n + m - 1) // m) * m


def _physical_vmem_bytes():
    """Generation-aware VMEM capacity (128 MiB v5e/v6e, 64 MiB per-TC v7x)."""
    try:
        return int(pltpu.get_tpu_info().vmem_capacity_bytes)
    except Exception:
        return 64 * 1024 * 1024  # conservative fallback (v7x per-TC)


def _choose_tile(B, D, x_itemsize, max_tb):
    """Pick the batch-tile (lane-axis) size.

    Multiple of 128, large enough to amortize the ~0.35us/step pipeline
    overhead, capped against ~25% of physical VMEM (double-buffered x/out
    tiles + activations), and capped so the grid keeps >=2 (ideally >=4)
    steps when the batch allows it (v7x megacore sharding).
    """
    phys = _physical_vmem_bytes()
    budget = phys // 4
    per_lane = 2 * D * x_itemsize + 2 * 4 + 4 * 24 * 4  # x dbl-buf + out dbl-buf + act slack
    cap = max(128, (budget // max(per_lane, 1)) // 128 * 128)

    lanes = _round_up(B, 128)
    tb = max(128, min(max_tb, cap, lanes))

    n_tiles = lanes // 128
    if n_tiles >= 2:
        target_steps = 4 if n_tiles >= 4 else 2
        tb = min(tb, max(128, pl.cdiv(n_tiles, target_steps) * 128))
    return tb, phys


def _value_kernel(x_ref, w1_ref, b1_ref, w2_ref, b2_ref, w3_ref, b3_ref, o_ref,
                  *, chunk, n_chunks):
    # Weights/biases are tiny and VMEM-resident (constant index maps).
    w1 = w1_ref[...]                         # (24, D)   transfer dtype
    b1 = b1_ref[...]                         # (24, 1)   f32
    w2 = w2_ref[...]                         # (24, 24)
    b2 = b2_ref[...]                         # (24, 1)
    w3 = w3_ref[...]                         # (1, 24)
    b3 = b3_ref[...]                         # (1, 1)
    cdt = w2.dtype                           # MXU input dtype (f32 or bf16)

    def body(c, carry):
        start = pl.multiple_of(c * chunk, chunk)
        x_c = x_ref[pl.ds(start, chunk), :]  # (chunk, D), batch rows

        # Layer 1: contract over D on the MXU -> (24, chunk); batch lands on
        # the lane axis without any wrapper-side transpose of x.
        h1 = lax.dot_general(
            w1, x_c, dimension_numbers=(((1,), (1,)), ((), ())),
            preferred_element_type=jnp.float32)
        h1 = jnp.tanh(h1 + b1)               # f32 tanh (valid on v5e too)
        # TODO(synk): on v6e/v7x tanh could run in bf16 on the EUP for extra
        # headroom; kept f32 so one kernel serves all generations.

        h2 = jnp.tanh(
            jnp.dot(w2, h1.astype(cdt), preferred_element_type=jnp.float32) + b2)

        out_c = jnp.dot(w3, h2.astype(cdt), preferred_element_type=jnp.float32) + b3
        o_ref[:, pl.ds(start, chunk)] = out_c     # lane-dense (1, chunk) store
        return carry

    lax.fori_loop(0, n_chunks, body, None, unroll=True)


def value_forward(x, params, *, max_tb=8192, transfer_dtype=None):
    """Run the Value MLP forward pass as a batch-tiled Pallas kernel.

    x: (B, num_inputs) — natural layout, no wrapper transpose/pad.
    params: w1 (24,D), b1 (24,1), w2 (24,24), b2 (24,1), w3 (1,24), b3 (1,1)
            (PyTorch-style (out_features, in_features) weight layout).
    transfer_dtype: None/f32 for exact f32 path, jnp.bfloat16 to halve HBM
            traffic (MXU still accumulates in f32, tanh stays f32).
    returns: (B, 1) float32 state values.
    """
    B, D = x.shape
    tdt = jnp.dtype(transfer_dtype) if transfer_dtype is not None else x.dtype

    x_in = x if x.dtype == tdt else x.astype(tdt)
    cast_w = lambda w: w if w.dtype == tdt else w.astype(tdt)
    w1, w2, w3 = cast_w(params["w1"]), cast_w(params["w2"]), cast_w(params["w3"])
    b1 = params["b1"].astype(jnp.float32)
    b2 = params["b2"].astype(jnp.float32)
    b3 = params["b3"].astype(jnp.float32)

    x_itemsize = jnp.dtype(tdt).itemsize
    tb, phys = _choose_tile(B, D, x_itemsize, max_tb)
    chunk = next(c for c in (1024, 512, 256, 128) if c <= tb and tb % c == 0)
    n_chunks = tb // chunk
    grid = (pl.cdiv(B, tb),)          # ragged last tile: OOB writes are masked

    weights_bytes = sum(int(a.size) * a.dtype.itemsize
                        for a in (w1, b1, w2, b2, w3, b3))
    needed = (2 * tb * D * x_itemsize        # double-buffered x tile
              + 2 * tb * 4                   # double-buffered out tile
              + 2 * weights_bytes            # resident weights/biases
              + 8 * 24 * chunk * 4           # in-flight activations per chunk
              + (2 << 20))                   # headroom
    vmem_limit = int(min(phys * 3 // 4, max(needed, 16 << 20)))

    const = lambda shape: pl.BlockSpec(shape, lambda i: (0, 0))
    kernel = functools.partial(_value_kernel, chunk=chunk, n_chunks=n_chunks)

    out = pl.pallas_call(
        kernel,
        out_shape=jax.ShapeDtypeStruct((1, B), jnp.float32),
        grid_spec=pltpu.PrefetchScalarGridSpec(
            num_scalar_prefetch=0,
            grid=grid,
            in_specs=[
                pl.BlockSpec((tb, D), lambda i: (i, 0)),   # x, natural layout, pipelined
                const((24, D)),                            # w1, resident
                const((24, 1)),                            # b1
                const((24, 24)),                           # w2
                const((24, 1)),                            # b2
                const((1, 24)),                            # w3
                const((1, 1)),                             # b3
            ],
            out_specs=pl.BlockSpec((1, tb), lambda i: (0, i)),
        ),
        compiler_params=pltpu.CompilerParams(
            dimension_semantics=("parallel",),             # v7x: shard batch over 2 TCs
            vmem_limit_bytes=vmem_limit,
        ),
    )(x_in, w1, b1, w2, b2, w3, b3)

    # (1, B) -> (B, 1): same element order, trivial reshape (B floats).
    return out.reshape(B, 1)


def init_value_params(key, num_inputs):
    """Deterministic init mimicking torch.nn.Linear defaults
    (U[-1/sqrt(fan_in), 1/sqrt(fan_in)], weight stored as (out, in)),
    then value_head.weight *= 0.1, value_head.bias *= 0.0 as in Value.__init__."""
    k1, k2, k3, k4, k5, k6 = jax.random.split(key, 6)

    def lin_init(kw, kb, fan_in, fan_out):
        bound = 1.0 / jnp.sqrt(jnp.float32(fan_in))
        w = jax.random.uniform(kw, (fan_out, fan_in), jnp.float32, -bound, bound)
        b = jax.random.uniform(kb, (fan_out, 1), jnp.float32, -bound, bound)
        return w, b

    w1, b1 = lin_init(k1, k2, num_inputs, 24)
    w2, b2 = lin_init(k3, k4, 24, 24)
    w3, b3 = lin_init(k5, k6, 24, 1)
    w3 = w3 * 0.1
    b3 = b3 * 0.0
    return {"w1": w1, "b1": b1, "w2": w2, "b2": b2, "w3": w3, "b3": b3}


def value_forward_ref(x, p):
    h1 = jnp.tanh(x @ p["w1"].T + p["b1"].T)
    h2 = jnp.tanh(h1 @ p["w2"].T + p["b2"].T)
    return h2 @ p["w3"].T + p["b3"].T


if __name__ == "__main__":
    key = jax.random.PRNGKey(0)
    k_param, k_x1, k_x2 = jax.random.split(key, 3)

    num_inputs = 32
    params = init_value_params(k_param, num_inputs)

    # Small batch: one ragged 128-lane tile, no padding materialized.
    batch1 = 8
    x1 = jax.random.normal(k_x1, (batch1, num_inputs), dtype=jnp.float32)
    out1 = jax.block_until_ready(value_forward(x1, params))
    ref1 = value_forward_ref(x1, params)
    assert out1.shape == (batch1, 1), out1.shape
    assert jnp.allclose(out1, ref1, atol=1e-5, rtol=1e-5), "mismatch vs JAX reference (B=8)"

    # Non-multiple batch: >=2 grid steps (v7x megacore path) + ragged last tile.
    batch2 = 200
    x2 = jax.random.normal(k_x2, (batch2, num_inputs), dtype=jnp.float32)
    out2 = jax.block_until_ready(value_forward(x2, params))
    ref2 = value_forward_ref(x2, params)
    assert out2.shape == (batch2, 1), out2.shape
    assert jnp.allclose(out2, ref2, atol=1e-5, rtol=1e-5), "mismatch vs JAX reference (B=200)"

    # bf16 transfer path (halved HBM bytes); f32 MXU accumulation + f32 tanh.
    out3 = jax.block_until_ready(value_forward(x2, params, transfer_dtype=jnp.bfloat16))
    assert out3.shape == (batch2, 1), out3.shape
    assert jnp.allclose(out3, ref2, atol=3e-2, rtol=0.0), "bf16 path mismatch (B=200)"

    print("KERNEL_OK")
</pallas_src>

<mosaic_0001>
module attributes {stable_mosaic.version = 11 : i64} {
  func.func @_value_kernel(%arg0: i32, %arg1: memref<128x32xf32, #tpu.memory_space<vmem>>, %arg2: memref<24x32xf32, #tpu.memory_space<vmem>>, %arg3: memref<24x1xf32, #tpu.memory_space<vmem>>, %arg4: memref<24x24xf32, #tpu.memory_space<vmem>>, %arg5: memref<24x1xf32, #tpu.memory_space<vmem>>, %arg6: memref<1x24xf32, #tpu.memory_space<vmem>>, %arg7: memref<1x1xf32, #tpu.memory_space<vmem>>, %arg8: memref<1x128xf32, #tpu.memory_space<vmem>>) attributes {dimension_semantics = [#tpu.dimension_semantics<parallel>], iteration_bounds = array<i64: 1>, scalar_prefetch = 0 : i64, scratch_operands = 0 : i64, tpu.core_type = #tpu.core_type<tc>, window_params = [{transform_indices = @transform_0, window_bounds = array<i64: 128, 32>}, {pipeline_mode = #tpu.pipeline_mode<synchronous>, transform_indices = @transform_1, window_bounds = array<i64: 24, 32>}, {pipeline_mode = #tpu.pipeline_mode<synchronous>, transform_indices = @transform_2, window_bounds = array<i64: 24, 1>}, {pipeline_mode = #tpu.pipeline_mode<synchronous>, transform_indices = @transform_3, window_bounds = array<i64: 24, 24>}, {pipeline_mode = #tpu.pipeline_mode<synchronous>, transform_indices = @transform_4, window_bounds = array<i64: 24, 1>}, {pipeline_mode = #tpu.pipeline_mode<synchronous>, transform_indices = @transform_5, window_bounds = array<i64: 1, 24>}, {pipeline_mode = #tpu.pipeline_mode<synchronous>, transform_indices = @transform_6, window_bounds = array<i64: 1, 1>}, {transform_indices = @transform_7, window_bounds = array<i64: 1, 128>}]} {
    %c0 = arith.constant 0 : index
    %c0_0 = arith.constant 0 : index
    %0 = vector.load %arg2[%c0, %c0_0] : memref<24x32xf32, #tpu.memory_space<vmem>>, vector<24x32xf32>
    %c0_1 = arith.constant 0 : index
    %c0_2 = arith.constant 0 : index
    %1 = vector.load %arg3[%c0_1, %c0_2] : memref<24x1xf32, #tpu.memory_space<vmem>>, vector<24x1xf32>
    %c0_3 = arith.constant 0 : index
    %c0_4 = arith.constant 0 : index
    %2 = vector.load %arg4[%c0_3, %c0_4] : memref<24x24xf32, #tpu.memory_space<vmem>>, vector<24x24xf32>
    %c0_5 = arith.constant 0 : index
    %c0_6 = arith.constant 0 : index
    %3 = vector.load %arg5[%c0_5, %c0_6] : memref<24x1xf32, #tpu.memory_space<vmem>>, vector<24x1xf32>
    %c0_7 = arith.constant 0 : index
    %c0_8 = arith.constant 0 : index
    %4 = vector.load %arg6[%c0_7, %c0_8] : memref<1x24xf32, #tpu.memory_space<vmem>>, vector<1x24xf32>
    %c0_9 = arith.constant 0 : index
    %c0_10 = arith.constant 0 : index
    %5 = vector.load %arg7[%c0_9, %c0_10] : memref<1x1xf32, #tpu.memory_space<vmem>>, vector<1x1xf32>
    %c0_i32 = arith.constant 0 : i32
    %c128_i32 = arith.constant 128 : i32
    %6 = arith.muli %c0_i32, %c128_i32 : i32
    %7 = tpu.assume_multiple %6, 128 : i32
    %8 = arith.index_cast %7 : i32 to index
    %c0_11 = arith.constant 0 : index
    %9 = vector.load %arg1[%8, %c0_11] : memref<128x32xf32, #tpu.memory_space<vmem>>, vector<128x32xf32>
    %cst = arith.constant dense<0.000000e+00> : vector<24x128xf32>
    %10 = tpu.matmul %0, %9, %cst {dimension_numbers = #tpu.dot_dimension_numbers<[1], [1], [0], [0], [0, 0, 1, 0], [], []>} : vector<24x32xf32>, vector<128x32xf32>, vector<24x128xf32> -> vector<24x128xf32>
    %11 = vector.broadcast %1 : vector<24x1xf32> to vector<24x128xf32>
    %12 = arith.addf %10, %11 : vector<24x128xf32>
    %13 = math.tanh %12 : vector<24x128xf32>
    %cst_12 = arith.constant dense<0.000000e+00> : vector<24x128xf32>
    %14 = tpu.matmul %2, %13, %cst_12 {dimension_numbers = #tpu.dot_dimension_numbers<[1], [0], [0], [1], [0, 0, 1, 1], [], []>} : vector<24x24xf32>, vector<24x128xf32>, vector<24x128xf32> -> vector<24x128xf32>
    %15 = vector.broadcast %3 : vector<24x1xf32> to vector<24x128xf32>
    %16 = arith.addf %14, %15 : vector<24x128xf32>
    %17 = math.tanh %16 : vector<24x128xf32>
    %cst_13 = arith.constant dense<0.000000e+00> : vector<1x128xf32>
    %18 = tpu.matmul %4, %17, %cst_13 {dimension_numbers = #tpu.dot_dimension_numbers<[1], [0], [0], [1], [0, 0, 1, 1], [], []>} : vector<1x24xf32>, vector<24x128xf32>, vector<1x128xf32> -> vector<1x128xf32>
    %19 = vector.broadcast %5 : vector<1x1xf32> to vector<1x128xf32>
    %20 = arith.addf %18, %19 : vector<1x128xf32>
    %c0_14 = arith.constant 0 : index
    %21 = arith.index_cast %7 : i32 to index
    %22 = vector.load %arg8[%c0_14, %21] : memref<1x128xf32, #tpu.memory_space<vmem>>, vector<1x128xf32>
    tpu.vector_store %arg8[%c0_14, %21], %20 {strides = array<i32>} : memref<1x128xf32, #tpu.memory_space<vmem>>, vector<1x128xf32>,
    %c1_i32 = arith.constant 1 : i32
    return
  }
  func.func @transform_0(%arg0: i32) -> (i32, i32) {
    %c0_i32 = arith.constant 0 : i32
    %c0_i32_0 = arith.constant 0 : i32
    return %arg0, %c0_i32 : i32, i32
  }
  func.func @transform_1(%arg0: i32) -> (i32, i32) {
    %c0_i32 = arith.constant 0 : i32
    %c0_i32_0 = arith.constant 0 : i32
    %c0_i32_1 = arith.constant 0 : i32
    return %c0_i32, %c0_i32_0 : i32, i32
  }
  func.func @transform_2(%arg0: i32) -> (i32, i32) {
    %c0_i32 = arith.constant 0 : i32
    %c0_i32_0 = arith.constant 0 : i32
    %c0_i32_1 = arith.constant 0 : i32
    return %c0_i32, %c0_i32_0 : i32, i32
  }
  func.func @transform_3(%arg0: i32) -> (i32, i32) {
    %c0_i32 = arith.constant 0 : i32
    %c0_i32_0 = arith.constant 0 : i32
    %c0_i32_1 = arith.constant 0 : i32
    return %c0_i32, %c0_i32_0 : i32, i32
  }
  func.func @transform_4(%arg0: i32) -> (i32, i32) {
    %c0_i32 = arith.constant 0 : i32
    %c0_i32_0 = arith.constant 0 : i32
    %c0_i32_1 = arith.constant 0 : i32
    return %c0_i32, %c0_i32_0 : i32, i32
  }
  func.func @transform_5(%arg0: i32) -> (i32, i32) {
    %c0_i32 = arith.constant 0 : i32
    %c0_i32_0 = arith.constant 0 : i32
    %c0_i32_1 = arith.constant 0 : i32
    return %c0_i32, %c0_i32_0 : i32, i32
  }
  func.func @transform_6(%arg0: i32) -> (i32, i32) {
    %c0_i32 = arith.constant 0 : i32
    %c0_i32_0 = arith.constant 0 : i32
    %c0_i32_1 = arith.constant 0 : i32
    return %c0_i32, %c0_i32_0 : i32, i32
  }
  func.func @transform_7(%arg0: i32) -> (i32, i32) {
    %c0_i32 = arith.constant 0 : i32
    %c0_i32_0 = arith.constant 0 : i32
    return %c0_i32, %arg0 : i32, i32
  }
}

</mosaic_0001>

<llo_original>
// kernel: tpu_custom_call.1
$region0: #{tpu_custom_call.1}
  #allocation0 [shape = 'u32[]', space=smem, size = 0x4, offset = 0x4, fixed_abs, tag = 'smem constant byte address 0x4 - core index']
  #allocation1 [shape = 'u32[144,128]{1,0:T(1,128)}', space=vmem, size = 0x12000, scoped, tag = 'internal scratch']
  #allocation2 [shape = 'f32[1,1]{1,0:T(1,128)S(1)}', space=vmem, size = 0x200, scoped, tag = 'scoped memory for tpu_custom_call.1']
  %s0 = inlined_call_operand.hbm [shape: f32[8,32], index: 0, kind: input, shape index: {}]
  %s1 = inlined_call_operand.vmem [shape: f32[24,32], index: 1, kind: input, shape index: {}]
  %s2 = inlined_call_operand.vmem [shape: f32[24,1], index: 2, kind: input, shape index: {}]
  %s3 = inlined_call_operand.vmem [shape: f32[24,24], index: 3, kind: input, shape index: {}]
  %s4 = inlined_call_operand.vmem [shape: f32[24,1], index: 4, kind: input, shape index: {}]
  %s5 = inlined_call_operand.vmem [shape: f32[1,24], index: 5, kind: input, shape index: {}]
  %s6 = inlined_call_operand.<no memory space> [shape: f32[1,1], index: 6, kind: input, shape index: {}]
  %s7 = inlined_call_operand.hbm [shape: f32[1,8], index: 7, kind: output, shape index: {}]
  %s8 = sld [smem:[#allocation0]]
  $region42: #{tpu_custom_call.1} parent=0
    _
  %s10 = ssub.s32 1, %s8
  %s11 = scalar_select 0, %s10, %s8
  %v12 = vstv %s6
  %13 = vst [vmem:[#allocation2] sm:$0x1] %v12
  $region1: #{tpu_custom_call.1} parent=0
    #allocation3 [shape = 'u8[65536]{0}', space=vmem, size = 0x10000, scoped, tag = 'input window, operand 0, single buffered']
    #allocation4 [shape = 's32[1]{0}', space=sflag, size = 0x4, scoped, tag = 'scoped memory for tpu_custom_call.1']
    #allocation5 [shape = 's32[1]{0}', space=sflag, size = 0x4, scoped, tag = 'scoped memory for tpu_custom_call.1']
    #allocation6 [shape = 'u8[512]{0}', space=vmem, size = 0x400, scoped, tag = 'output window, operand 0, single buffered']
    %14 = vsyncpa [#allocation4], 0
    %15 = vsyncpa [#allocation5], 0
    // Predicated region
    $region2: #{tpu_custom_call.1} parent=1 // pred_check
      _
    $region3: #{tpu_custom_call.1} parent=1 // pred_check_branch
      %17 = sbr.rel (0) target = $region5
    $region4: #{tpu_custom_call.1} parent=1 // pred_region
      %s19 = ssub.s32 2048, 128
      %20 = vsyncadd [#allocation4], %s19
      %s21 = sshll.u32 [#allocation3], 4
      %s22 = int_to_ptr.vmem [resolvable:$true] %s21
      %27 = dma.hbm_to_vmem [thread:$0]  %s0, 128, %s22, [#allocation4], 128, 128, 8
    $region5: #{tpu_custom_call.1} parent=1 // pred_fallthru
      _
    // Predicated region
    $region6: #{tpu_custom_call.1} parent=1 // pred_check
      _
    $region7: #{tpu_custom_call.1} parent=1 // pred_check_branch
      %29 = sbr.rel (0) target = $region9
    $region8: #{tpu_custom_call.1} parent=1 // pred_region
      _
    $region9: #{tpu_custom_call.1} parent=1 // pred_fallthru
      _
    // Predicated region
    $region10: #{tpu_custom_call.1} parent=1 // pred_check
      _
    $region11: #{tpu_custom_call.1} parent=1 // pred_check_branch
      %31 = sbr.rel (0) target = $region13
    $region12: #{tpu_custom_call.1} parent=1 // pred_region
      _
    $region13: #{tpu_custom_call.1} parent=1 // pred_fallthru
      _
    // Predicated region
    $region14: #{tpu_custom_call.1} parent=1 // pred_check
      _
    $region15: #{tpu_custom_call.1} parent=1 // pred_check_branch
      %33 = sbr.rel (0) target = $region17
    $region16: #{tpu_custom_call.1} parent=1 // pred_region
      _
    $region17: #{tpu_custom_call.1} parent=1 // pred_fallthru
      _
    // Predicated region
    $region18: #{tpu_custom_call.1} parent=1 // pred_check
      _
    $region19: #{tpu_custom_call.1} parent=1 // pred_check_branch
      %35 = sbr.rel (0) target = $region21
    $region20: #{tpu_custom_call.1} parent=1 // pred_region
      _
    $region21: #{tpu_custom_call.1} parent=1 // pred_fallthru
      _
    // Predicated region
    $region22: #{tpu_custom_call.1} parent=1 // pred_check
      _
    $region23: #{tpu_custom_call.1} parent=1 // pred_check_branch
      %37 = sbr.rel (0) target = $region25
    $region24: #{tpu_custom_call.1} parent=1 // pred_region
      _
    $region25: #{tpu_custom_call.1} parent=1 // pred_fallthru
      _
    // Predicated region
    $region26: #{tpu_custom_call.1} parent=1 // pred_check
      _
    $region27: #{tpu_custom_call.1} parent=1 // pred_check_branch
      %39 = sbr.rel (0) target = $region29
    $region28: #{tpu_custom_call.1} parent=1 // pred_region
      _
    $region29: #{tpu_custom_call.1} parent=1 // pred_fallthru
      _
    // Predicated region
    $region30: #{tpu_custom_call.1} parent=1 // pred_check
      _
    $region31: #{tpu_custom_call.1} parent=1 // pred_check_branch
      %41 = sbr.rel (0) target = $region33
    $region32: #{tpu_custom_call.1} parent=1 // pred_region
      %42 = dma.done [#allocation4], 2048
    $region33: #{tpu_custom_call.1} parent=1 // pred_fallthru
      _
    %v43 = vld [vmem:[%s1] sm:$0xff]
    %v44 = vld [vmem:[%s1 + $0x8] sm:$0xff]
    %v45 = vld [vmem:[%s1 + $0x10] sm:$0xff]
    %v46 = vld [vmem:[%s2] sm:$0xff]
    %v47 = vld [vmem:[%s2 + $0x8] sm:$0xff]
    %v48 = vld [vmem:[%s2 + $0x10] sm:$0xff]
    %v49 = vld [vmem:[%s3] sm:$0xff]
    %v50 = vld [vmem:[%s3 + $0x8] sm:$0xff]
    %v51 = vld [vmem:[%s3 + $0x10] sm:$0xff]
    %v52 = vld [vmem:[%s4] sm:$0xff]
    %v53 = vld [vmem:[%s4 + $0x8] sm:$0xff]
    %v54 = vld [vmem:[%s4 + $0x10] sm:$0xff]
    %v55 = vld [vmem:[%s5] sm:$0x1]
    %v56 = vld [vmem:[#allocation2] sm:$0x1]
    %v57 = vld [vmem:[#allocation3] sm:$0xff]
    %v58 = vld [vmem:[#allocation3 + $0x8] sm:$0xff]
    %v59 = vld [vmem:[#allocation3 + $0x10] sm:$0xff]
    %v60 = vld [vmem:[#allocation3 + $0x18] sm:$0xff]
    %v61 = vld [vmem:[#allocation3 + $0x20] sm:$0xff]
    %v62 = vld [vmem:[#allocation3 + $0x28] sm:$0xff]
    %v63 = vld [vmem:[#allocation3 + $0x30] sm:$0xff]
    %v64 = vld [vmem:[#allocation3 + $0x38] sm:$0xff]
    %v65 = vld [vmem:[#allocation3 + $0x40] sm:$0xff]
    %v66 = vld [vmem:[#allocation3 + $0x48] sm:$0xff]
    %v67 = vld [vmem:[#allocation3 + $0x50] sm:$0xff]
    %v68 = vld [vmem:[#allocation3 + $0x58] sm:$0xff]
    %v69 = vld [vmem:[#allocation3 + $0x60] sm:$0xff]
    %v70 = vld [vmem:[#allocation3 + $0x68] sm:$0xff]
    %v71 = vld [vmem:[#allocation3 + $0x70] sm:$0xff]
    %v72 = vld [vmem:[#allocation3 + $0x78] sm:$0xff]
    %74 = vset.pattern.permute.xlu0 0
    %75 = vperm.xlu0 %74, %v46
    %v76 = vpop.permute.xlu0 %75
    %79 = vset.pattern.permute.xlu0 0
    %80 = vperm.xlu0 %79, %v47
    %v81 = vpop.permute.xlu0 %80
    %84 = vset.pattern.permute.xlu0 0
    %85 = vperm.xlu0 %84, %v48
    %v86 = vpop.permute.xlu0 %85
    %vm88 = vcmask 261120
    %v90 = vsel %vm88, %v43, 0
    %v93 = vsel %vm88, %v44, 0
    %v96 = vsel %vm88, %v45, 0
    %v99 = vsel %vm88, %v57, 0
    %v102 = vsel %vm88, %v58, 0
    %v105 = vsel %vm88, %v59, 0
    %v108 = vsel %vm88, %v60, 0
    %v111 = vsel %vm88, %v61, 0
    %v114 = vsel %vm88, %v62, 0
    %v117 = vsel %vm88, %v63, 0
    %v120 = vsel %vm88, %v64, 0
    %v123 = vsel %vm88, %v65, 0
    %v126 = vsel %vm88, %v66, 0
    %v129 = vsel %vm88, %v67, 0
    %v132 = vsel %vm88, %v68, 0
    %v135 = vsel %vm88, %v69, 0
    %v138 = vsel %vm88, %v70, 0
    %v141 = vsel %vm88, %v71, 0
    %v144 = vsel %vm88, %v72, 0
    %146 = vmatprep.subr.mxu0 0.0
    %147 = vmatpush1.xpose.msra.mxu0 %v144
    %148 = vmatprep.subr.mxu0 0.0
    %149 = vmatpush1.xpose.msra.mxu0 %v141
    %150 = vmatprep.subr.mxu0 0.0
    %151 = vmatpush1.xpose.msra.mxu0 %v138
    %152 = vmatprep.subr.mxu0 0.0
    %153 = vmatpush1.xpose.msra.mxu0 %v135
    %154 = vmatprep.subr.mxu0 0.0
    %155 = vmatpush1.xpose.msra.mxu0 %v132
    %156 = vmatprep.subr.mxu0 0.0
    %157 = vmatpush1.xpose.msra.mxu0 %v129
    %158 = vmatprep.subr.mxu0 0.0
    %159 = vmatpush1.xpose.msra.mxu0 %v126
    %160 = vmatprep.subr.mxu0 0.0
    %161 = vmatpush1.xpose.msra.mxu0 %v123
    %162 = vmatprep.subr.mxu0 0.0
    %163 = vmatpush1.xpose.msra.mxu0 %v120
    %164 = vmatprep.subr.mxu0 0.0
    %165 = vmatpush1.xpose.msra.mxu0 %v117
    %166 = vmatprep.subr.mxu0 0.0
    %167 = vmatpush1.xpose.msra.mxu0 %v114
    %168 = vmatprep.subr.mxu0 0.0
    %169 = vmatpush1.xpose.msra.mxu0 %v111
    %170 = vmatprep.subr.mxu0 0.0
    %171 = vmatpush1.xpose.msra.mxu0 %v108
    %172 = vmatprep.subr.mxu0 0.0
    %173 = vmatpush1.xpose.msra.mxu0 %v105
    %174 = vmatprep.subr.mxu0 0.0
    %175 = vmatpush1.xpose.msra.mxu0 %v102
    %176 = vmatprep.subr.mxu0 0.0
    %177 = vmatpush1.xpose.msra.mxu0 %v99
    %178 = vmatprep.subr.mxu0 0.0
    %179 = vmatpush2.xpose.msra.mxu0 0.0
    %180 = vmatprep.subr.mxu0 0.0
    %181 = vmatpush2.xpose.msra.mxu0 0.0
    %182 = vmatprep.subr.mxu0 0.0
    %183 = vmatpush2.xpose.msra.mxu0 0.0
    %184 = vmatprep.subr.mxu0 0.0
    %185 = vmatpush2.xpose.msra.mxu0 0.0
    %186 = vmatprep.subr.mxu0 0.0
    %187 = vmatpush2.xpose.msra.mxu0 0.0
    %188 = vmatprep.subr.mxu0 0.0
    %189 = vmatpush2.xpose.msra.mxu0 0.0
    %190 = vmatprep.subr.mxu0 0.0
    %191 = vmatpush2.xpose.msra.mxu0 0.0
    %192 = vmatprep.subr.mxu0 0.0
    %193 = vmatpush2.xpose.msra.mxu0 0.0
    %194 = vmatprep.subr.mxu0 0.0
    %195 = vmatpush2.xpose.msra.mxu0 0.0
    %196 = vmatprep.subr.mxu0 0.0
    %197 = vmatpush2.xpose.msra.mxu0 0.0
    %198 = vmatprep.subr.mxu0 0.0
    %199 = vmatpush2.xpose.msra.mxu0 0.0
    %200 = vmatprep.subr.mxu0 0.0
    %201 = vmatpush2.xpose.msra.mxu0 0.0
    %202 = vmatprep.subr.mxu0 0.0
    %203 = vmatpush2.xpose.msra.mxu0 0.0
    %204 = vmatprep.subr.mxu0 0.0
    %205 = vmatpush2.xpose.msra.mxu0 0.0
    %206 = vmatprep.subr.mxu0 0.0
    %207 = vmatpush2.xpose.msra.mxu0 0.0
    %208 = vmatprep.subr.mxu0 0.0
    %209 = vmatpush2.xpose.msra.mxu0 0.0
    %210 = vmatprep.mubr.f32.mxu0 0.0
    %211 = vmatmul.mubr.f32.gmra.mxu0 %v90
    %v212 = vpop.f32.mrf.mxu0
    %v213 = vadd.f32 %v76, %v212
    %v214 = vpop.f32.mrf.mxu0
    %215 = vmatprep.mubr.f32.mxu0 0.0
    %216 = vmatmul.mubr.f32.gmra.mxu0 %v93
    %v217 = vpop.f32.mrf.mxu0
    %v218 = vadd.f32 %v81, %v217
    %v219 = vpop.f32.mrf.mxu0
    %220 = vmatprep.mubr.f32.mxu0 0.0
    %221 = vmatmul.mubr.f32.gmra.mxu0 %v96
    %v222 = vpop.f32.mrf.mxu0
    %v223 = vadd.f32 %v86, %v222
    %v224 = vpop.f32.mrf.mxu0
    %225 = vdwg.mxu0
    %v226 = vtanh.pop %v213
    %v227 = vtanh.pop %v218
    %v228 = vtanh.pop %v223
    %230 = vset.pattern.permute.xlu0 0
    %231 = vperm.xlu0 %230, %v52
    %v232 = vpop.permute.xlu0 %231
    %235 = vset.pattern.permute.xlu0 0
    %236 = vperm.xlu0 %235, %v53
    %v237 = vpop.permute.xlu0 %236
    %240 = vset.pattern.permute.xlu0 0
    %241 = vperm.xlu0 %240, %v54
    %v242 = vpop.permute.xlu0 %241
    %vm244 = vcmask 195584
    %v246 = vsel %vm244, %v49, 0
    %v249 = vsel %vm244, %v50, 0
    %v252 = vsel %vm244, %v51, 0
    %254 = vmatprep.subr.mxu0 0.0
    %255 = vmatpush1.msra.mxu0 0.0
    %256 = vmatprep.subr.mxu0 0.0
    %257 = vmatpush1.msra.mxu0 0.0
    %258 = vmatprep.subr.mxu0 0.0
    %259 = vmatpush1.msra.mxu0 0.0
    %260 = vmatprep.subr.mxu0 0.0
    %261 = vmatpush1.msra.mxu0 0.0
    %262 = vmatprep.subr.mxu0 0.0
    %263 = vmatpush1.msra.mxu0 0.0
    %264 = vmatprep.subr.mxu0 0.0
    %265 = vmatpush1.msra.mxu0 0.0
    %266 = vmatprep.subr.mxu0 0.0
    %267 = vmatpush1.msra.mxu0 0.0
    %268 = vmatprep.subr.mxu0 0.0
    %269 = vmatpush1.msra.mxu0 0.0
    %270 = vmatprep.subr.mxu0 0.0
    %271 = vmatpush1.msra.mxu0 0.0
    %272 = vmatprep.subr.mxu0 0.0
    %273 = vmatpush1.msra.mxu0 0.0
    %274 = vmatprep.subr.mxu0 0.0
    %275 = vmatpush1.msra.mxu0 0.0
    %276 = vmatprep.subr.mxu0 0.0
    %277 = vmatpush1.msra.mxu0 0.0
    %278 = vmatprep.subr.mxu0 0.0
    %279 = vmatpush1.msra.mxu0 0.0
    %280 = vmatprep.subr.mxu0 0.0
    %281 = vmatpush1.msra.mxu0 %v228
    %282 = vmatprep.subr.mxu0 0.0
    %283 = vmatpush1.msra.mxu0 %v227
    %284 = vmatprep.subr.mxu0 0.0
    %285 = vmatpush1.msra.mxu0 %v226
    %286 = vmatprep.subr.mxu0 0.0
    %287 = vmatpush2.msra.mxu0 0.0
    %288 = vmatprep.subr.mxu0 0.0
    %289 = vmatpush2.msra.mxu0 0.0
    %290 = vmatprep.subr.mxu0 0.0
    %291 = vmatpush2.msra.mxu0 0.0
    %292 = vmatprep.subr.mxu0 0.0
    %293 = vmatpush2.msra.mxu0 0.0
    %294 = vmatprep.subr.mxu0 0.0
    %295 = vmatpush2.msra.mxu0 0.0
    %296 = vmatprep.subr.mxu0 0.0
    %297 = vmatpush2.msra.mxu0 0.0
    %298 = vmatprep.subr.mxu0 0.0
    %299 = vmatpush2.msra.mxu0 0.0
    %300 = vmatprep.subr.mxu0 0.0
    %301 = vmatpush2.msra.mxu0 0.0
    %302 = vmatprep.subr.mxu0 0.0
    %303 = vmatpush2.msra.mxu0 0.0
    %304 = vmatprep.subr.mxu0 0.0
    %305 = vmatpush2.msra.mxu0 0.0
    %306 = vmatprep.subr.mxu0 0.0
    %307 = vmatpush2.msra.mxu0 0.0
    %308 = vmatprep.subr.mxu0 0.0
    %309 = vmatpush2.msra.mxu0 0.0
    %310 = vmatprep.subr.mxu0 0.0
    %311 = vmatpush2.msra.mxu0 0.0
    %312 = vmatprep.subr.mxu0 0.0
    %313 = vmatpush2.msra.mxu0 0.0
    %314 = vmatprep.subr.mxu0 0.0
    %315 = vmatpush2.msra.mxu0 0.0
    %316 = vmatprep.subr.mxu0 0.0
    %317 = vmatpush2.msra.mxu0 0.0
    %318 = vmatprep.mubr.f32.mxu0 0.0
    %319 = vmatmul.mubr.f32.gmra.mxu0 %v246
    %v320 = vpop.f32.mrf.mxu0
    %v321 = vadd.f32 %v232, %v320
    %v322 = vpop.f32.mrf.mxu0
    %323 = vmatprep.mubr.f32.mxu0 0.0
    %324 = vmatmul.mubr.f32.gmra.mxu0 %v249
    %v325 = vpop.f32.mrf.mxu0
    %v326 = vadd.f32 %v237, %v325
    %v327 = vpop.f32.mrf.mxu0
    %328 = vmatprep.mubr.f32.mxu0 0.0
    %329 = vmatmul.mubr.f32.gmra.mxu0 %v252
    %v330 = vpop.f32.mrf.mxu0
    %v331 = vadd.f32 %v242, %v330
    %v332 = vpop.f32.mrf.mxu0
    %333 = vdwg.mxu0
    %v334 = vtanh.pop %v321
    %v335 = vtanh.pop %v326
    %v336 = vtanh.pop %v331
    %338 = vset.pattern.permute.xlu0 0
    %339 = vperm.xlu0 %338, %v56
    %v340 = vpop.permute.xlu0 %339
    %v342 = vlaneseq
    %v343 = vshrl.u32 %v342, 7
    %v344 = vsub.s32 0, %v343
    %v345 = vrot.slane %v340, %v344
    %v347 = vsel %vm244, %v55, 0
    %349 = vmatprep.subr.mxu0 0.0
    %350 = vmatpush1.msra.mxu0 0.0
    %351 = vmatprep.subr.mxu0 0.0
    %352 = vmatpush1.msra.mxu0 0.0
    %353 = vmatprep.subr.mxu0 0.0
    %354 = vmatpush1.msra.mxu0 0.0
    %355 = vmatprep.subr.mxu0 0.0
    %356 = vmatpush1.msra.mxu0 0.0
    %357 = vmatprep.subr.mxu0 0.0
    %358 = vmatpush1.msra.mxu0 0.0
    %359 = vmatprep.subr.mxu0 0.0
    %360 = vmatpush1.msra.mxu0 0.0
    %361 = vmatprep.subr.mxu0 0.0
    %362 = vmatpush1.msra.mxu0 0.0
    %363 = vmatprep.subr.mxu0 0.0
    %364 = vmatpush1.msra.mxu0 0.0
    %365 = vmatprep.subr.mxu0 0.0
    %366 = vmatpush1.msra.mxu0 0.0
    %367 = vmatprep.subr.mxu0 0.0
    %368 = vmatpush1.msra.mxu0 0.0
    %369 = vmatprep.subr.mxu0 0.0
    %370 = vmatpush1.msra.mxu0 0.0
    %371 = vmatprep.subr.mxu0 0.0
    %372 = vmatpush1.msra.mxu0 0.0
    %373 = vmatprep.subr.mxu0 0.0
    %374 = vmatpush1.msra.mxu0 0.0
    %375 = vmatprep.subr.mxu0 0.0
    %376 = vmatpush1.msra.mxu0 %v336
    %377 = vmatprep.subr.mxu0 0.0
    %378 = vmatpush1.msra.mxu0 %v335
    %379 = vmatprep.subr.mxu0 0.0
    %380 = vmatpush1.msra.mxu0 %v334
    %381 = vmatprep.subr.mxu0 0.0
    %382 = vmatpush2.msra.mxu0 0.0
    %383 = vmatprep.subr.mxu0 0.0
    %384 = vmatpush2.msra.mxu0 0.0
    %385 = vmatprep.subr.mxu0 0.0
    %386 = vmatpush2.msra.mxu0 0.0
    %387 = vmatprep.subr.mxu0 0.0
    %388 = vmatpush2.msra.mxu0 0.0
    %389 = vmatprep.subr.mxu0 0.0
    %390 = vmatpush2.msra.mxu0 0.0
    %391 = vmatprep.subr.mxu0 0.0
    %392 = vmatpush2.msra.mxu0 0.0
    %393 = vmatprep.subr.mxu0 0.0
    %394 = vmatpush2.msra.mxu0 0.0
    %395 = vmatprep.subr.mxu0 0.0
    %396 = vmatpush2.msra.mxu0 0.0
    %397 = vmatprep.subr.mxu0 0.0
    %398 = vmatpush2.msra.mxu0 0.0
    %399 = vmatprep.subr.mxu0 0.0
    %400 = vmatpush2.msra.mxu0 0.0
    %401 = vmatprep.subr.mxu0 0.0
    %402 = vmatpush2.msra.mxu0 0.0
    %403 = vmatprep.subr.mxu0 0.0
    %404 = vmatpush2.msra.mxu0 0.0
    %405 = vmatprep.subr.mxu0 0.0
    %406 = vmatpush2.msra.mxu0 0.0
    %407 = vmatprep.subr.mxu0 0.0
    %408 = vmatpush2.msra.mxu0 0.0
    %409 = vmatprep.subr.mxu0 0.0
    %410 = vmatpush2.msra.mxu0 0.0
    %411 = vmatprep.subr.mxu0 0.0
    %412 = vmatpush2.msra.mxu0 0.0
    %413 = vmatprep.mubr.f32.mxu0 0.0
    %414 = vmatmul.mubr.f32.gmra.mxu0 %v347
    %v415 = vpop.f32.mrf.mxu0
    %v416 = vadd.f32 %v345, %v415
    %v417 = vpop.f32.mrf.mxu0
    %418 = vdwg.mxu0
    %419 = vst [vmem:[#allocation6] sm:$0x1] %v416
    // Predicated region
    $region34: #{tpu_custom_call.1} parent=1 // pred_check
      _
    $region35: #{tpu_custom_call.1} parent=1 // pred_check_branch
      %421 = sbr.rel (0) target = $region37
    $region36: #{tpu_custom_call.1} parent=1 // pred_region
      %s423 = ssub.s32 16, 16
      %424 = vsyncadd [#allocation5], %s423
      %s426 = sshll.u32 [#allocation6], 4
      %s427 = int_to_ptr.vmem [resolvable:$true] %s426
      %429 = dma.vmem_to_hbm [thread:$0]  %s427, 16, %s7, [#allocation5]
    $region37: #{tpu_custom_call.1} parent=1 // pred_fallthru
      _
    // Predicated region
    $region38: #{tpu_custom_call.1} parent=1 // pred_check
      _
    $region39: #{tpu_custom_call.1} parent=1 // pred_check_branch
      %431 = sbr.rel (0) target = $region41
    $region40: #{tpu_custom_call.1} parent=1 // pred_region
      %432 = dma.done [#allocation5], 16
    $region41: #{tpu_custom_call.1} parent=1 // pred_fallthru
      _
    %433 = vsyncpa [#allocation4], 1
    %434 = vsyncpa [#allocation5], 1

</llo_original>
